<compile_context>
chip_gen: v5e
topology: v5e:2x2
jax: 0.10.0
libtpu: 0.0.40
codegen_flags: <defaults>
</compile_context>

<pallas_src>
import functools

import jax
import jax.numpy as jnp
from jax.experimental import pallas as pl
from jax.experimental.pallas import tpu as pltpu

EPS = 1e-5
LANES = 128


def _match_predictor_kernel(dims, x_ref, p_ref, out_ref):
    """Fused forward: 4 MXU passes, all params carved from one packed buffer."""
    (in_size, h1, h2, h4, out_size, r_w1, r_w2, r_w3, r_w4, r_b) = dims

    x = x_ref[...]

    # ---- layer 1 fused with skip1:  x @ [w1 | ws1] + [b1 | bs1] ----
    w1c = p_ref[r_w1:r_w1 + in_size, 0:h1 + h2]
    b1c = p_ref[r_b + 0:r_b + 1, 0:h1 + h2]
    h = jnp.dot(x, w1c, preferred_element_type=jnp.float32) + b1c
    x1 = jnp.maximum(h[:, 0:h1], 0.0)          # relu(fc1(x))   (bn1 folded ahead)
    skip1 = h[:, h1:h1 + h2]                   # skip1(x)

    # ---- layer 2 fused with skip2:  x1 @ [w2' | ws2'] + [b2' | bs2'] ----
    w2c = p_ref[r_w2:r_w2 + h1, 0:h2 + h4]
    b2c = p_ref[r_b + 1:r_b + 2, 0:h2 + h4]
    g = jnp.dot(x1, w2c, preferred_element_type=jnp.float32) + b2c
    x2 = jnp.maximum(g[:, 0:h2] + skip1, 0.0)  # relu(fc2(x1) + skip1)
    skip2 = g[:, h2:h2 + h4]                   # skip2(x1)

    # ---- layer 3 ----
    w3 = p_ref[r_w3:r_w3 + h2, 0:h4]
    b3 = p_ref[r_b + 2:r_b + 3, 0:h4]
    x3 = jnp.maximum(
        jnp.dot(x2, w3, preferred_element_type=jnp.float32) + b3 + skip2, 0.0)

    # ---- head ----
    w4 = p_ref[r_w4:r_w4 + h4, 0:out_size]
    b4 = p_ref[r_b + 3:r_b + 4, 0:out_size]
    out_ref[...] = (
        jnp.dot(x3, w4, preferred_element_type=jnp.float32) + b4
    ).astype(out_ref.dtype)


def fold_and_pack(params, apply_bn):
    """Fold eval-mode BN into the next layer and pack everything into one [R,128] buffer."""
    w1, b1 = params["w1"], params["b1"]
    ws1, bs1 = params["ws1"], params["bs1"]
    w2, b2 = params["w2"], params["b2"]
    ws2, bs2 = params["ws2"], params["bs2"]
    w3, b3 = params["w3"], params["b3"]
    w4, b4 = params["w4"], params["b4"]

    if apply_bn:
        def affine(g, be, m, v):
            s = g * jax.lax.rsqrt(v + EPS)     # [1, F]
            t = be - m * s                     # [1, F]
            return s, t

        s1, t1 = affine(params["g1"], params["be1"], params["m1"], params["v1"])
        s2, t2 = affine(params["g2"], params["be2"], params["m2"], params["v2"])
        s3, t3 = affine(params["g3"], params["be3"], params["m3"], params["v3"])
        # bn1 feeds both fc2 and skip2 (they consume x1)
        w2, b2 = s1.T * w2, b2 + t1 @ w2
        ws2, bs2 = s1.T * ws2, bs2 + t1 @ ws2
        # bn2 feeds fc3
        w3, b3 = s2.T * w3, b3 + t2 @ w3
        # bn3 feeds fc4
        w4, b4 = s3.T * w4, b4 + t3 @ w4

    in_size, h1 = w1.shape
    h2 = w2.shape[1]
    h4 = w3.shape[1]
    out_size = w4.shape[1]
    assert max(h1 + h2, h2 + h4, h4, out_size) <= LANES, "feature dims exceed one lane tile"

    w1c = jnp.concatenate([w1, ws1], axis=1)   # [in, h1+h2]
    b1c = jnp.concatenate([b1, bs1], axis=1)   # [1,  h1+h2]
    w2c = jnp.concatenate([w2, ws2], axis=1)   # [h1, h2+h4]
    b2c = jnp.concatenate([b2, bs2], axis=1)   # [1,  h2+h4]

    def pad_lanes(a):
        return jnp.pad(a, ((0, 0), (0, LANES - a.shape[1])))

    r_w1 = 0
    r_w2 = r_w1 + in_size
    r_w3 = r_w2 + h1
    r_w4 = r_w3 + h2
    r_b = r_w4 + h4
    n_rows = r_b + 4
    n_rows_pad = -(-n_rows // 8) * 8

    packed = jnp.concatenate(
        [pad_lanes(w1c), pad_lanes(w2c), pad_lanes(w3), pad_lanes(w4),
         pad_lanes(b1c), pad_lanes(b2c), pad_lanes(b3), pad_lanes(b4)],
        axis=0)
    packed = jnp.pad(packed, ((0, n_rows_pad - n_rows), (0, 0)))

    dims = (in_size, h1, h2, h4, out_size, r_w1, r_w2, r_w3, r_w4, r_b)
    return packed, dims


def match_predictor_forward(x, params, block_b=None):
    """Full forward pass: one pallas_call, 2 input DMAs, batch grid for large B."""
    B, _ = x.shape
    apply_bn = B > 1  # matches the module's `if x.shape[0] > 1` guard (eval mode)
    packed, dims = fold_and_pack(params, apply_bn)
    out_size = dims[4]

    if block_b is None:
        block_b = min(B, 512)
    b_pad = -(-B // block_b) * block_b
    x_in = x if b_pad == B else jnp.pad(x, ((0, b_pad - B), (0, 0)))
    grid = (b_pad // block_b,)

    out = pl.pallas_call(
        functools.partial(_match_predictor_kernel, dims),
        out_shape=jax.ShapeDtypeStruct((b_pad, out_size), jnp.float32),
        grid=grid,
        in_specs=[
            pl.BlockSpec((block_b, x.shape[1]), lambda i: (i, 0)),
            pl.BlockSpec(packed.shape, lambda i: (0, 0)),   # params stay resident
        ],
        out_specs=pl.BlockSpec((block_b, out_size), lambda i: (i, 0)),
        compiler_params=pltpu.CompilerParams(dimension_semantics=("parallel",)),
    )(x_in, packed)
    return out if b_pad == B else out[:B]


def init_params(key, input_size, hidden_size, output_size):
    """Deterministic synthetic parameter init (matches module shapes)."""
    h2 = hidden_size // 2
    h4 = hidden_size // 4

    def lin(k, fan_in, fan_out):
        kw, kb = jax.random.split(k)
        bound = 1.0 / jnp.sqrt(fan_in)
        w = jax.random.uniform(kw, (fan_in, fan_out), jnp.float32, -bound, bound)
        b = jax.random.uniform(kb, (1, fan_out), jnp.float32, -bound, bound)
        return w, b

    def bn_params(k, n):
        kg, kb, km, kv = jax.random.split(k, 4)
        gamma = 1.0 + 0.1 * jax.random.normal(kg, (1, n), jnp.float32)
        beta = 0.1 * jax.random.normal(kb, (1, n), jnp.float32)
        mean = 0.1 * jax.random.normal(km, (1, n), jnp.float32)
        var = 1.0 + 0.1 * jax.random.uniform(kv, (1, n), jnp.float32)
        return gamma, beta, mean, var

    keys = jax.random.split(key, 9)
    p = {}
    p["w1"], p["b1"] = lin(keys[0], input_size, hidden_size)
    p["g1"], p["be1"], p["m1"], p["v1"] = bn_params(keys[1], hidden_size)
    p["w2"], p["b2"] = lin(keys[2], hidden_size, h2)
    p["g2"], p["be2"], p["m2"], p["v2"] = bn_params(keys[3], h2)
    p["w3"], p["b3"] = lin(keys[4], h2, h4)
    p["g3"], p["be3"], p["m3"], p["v3"] = bn_params(keys[5], h4)
    p["w4"], p["b4"] = lin(keys[6], h4, output_size)
    p["ws1"], p["bs1"] = lin(keys[7], input_size, h2)
    p["ws2"], p["bs2"] = lin(keys[8], hidden_size, h4)
    return p


def reference_forward(x, params, apply_bn=True):
    """Pure-JAX reference of the same (eval-mode) forward, unfolded BN, for verification."""
    def bn(h, g, be, m, v):
        return g * (h - m) * jax.lax.rsqrt(v + EPS) + be

    x1 = jnp.maximum(x @ params["w1"] + params["b1"], 0.0)
    if apply_bn:
        x1 = bn(x1, params["g1"], params["be1"], params["m1"], params["v1"])
    skip1 = x @ params["ws1"] + params["bs1"]
    x2 = jnp.maximum(x1 @ params["w2"] + params["b2"] + skip1, 0.0)
    if apply_bn:
        x2 = bn(x2, params["g2"], params["be2"], params["m2"], params["v2"])
    skip2 = x1 @ params["ws2"] + params["bs2"]
    x3 = jnp.maximum(x2 @ params["w3"] + params["b3"] + skip2, 0.0)
    if apply_bn:
        x3 = bn(x3, params["g3"], params["be3"], params["m3"], params["v3"])
    return x3 @ params["w4"] + params["b4"]


if __name__ == "__main__":
    key = jax.random.PRNGKey(0)
    k_x, k_p = jax.random.split(key)

    batch = 8
    input_size = 16
    hidden_size = 32
    output_size = 4

    x = jax.random.normal(k_x, (batch, input_size), jnp.float32)
    params = init_params(k_p, input_size, hidden_size, output_size)

    out = match_predictor_forward(x, params)
    out = jax.block_until_ready(out)

    ref = reference_forward(x, params, apply_bn=batch > 1)
    assert out.shape == (batch, output_size)
    assert jnp.allclose(out, ref, atol=1e-4, rtol=1e-4), "mismatch vs reference"

    print("KERNEL_OK")
</pallas_src>

<mosaic_0001>
module attributes {stable_mosaic.version = 11 : i64} {
  func.func @_match_predictor_kernel(%arg0: i32, %arg1: memref<8x16xf32, #tpu.memory_space<vmem>>, %arg2: memref<80x128xf32, #tpu.memory_space<vmem>>, %arg3: memref<8x4xf32, #tpu.memory_space<vmem>>) attributes {dimension_semantics = [#tpu.dimension_semantics<parallel>], iteration_bounds = array<i64: 1>, scalar_prefetch = 0 : i64, scratch_operands = 0 : i64, tpu.core_type = #tpu.core_type<tc>, window_params = [{transform_indices = @transform_0, window_bounds = array<i64: 8, 16>}, {pipeline_mode = #tpu.pipeline_mode<synchronous>, transform_indices = @transform_1, window_bounds = array<i64: 80, 128>}, {transform_indices = @transform_2, window_bounds = array<i64: 8, 4>}]} {
    %c0 = arith.constant 0 : index
    %c0_0 = arith.constant 0 : index
    %0 = vector.load %arg1[%c0, %c0_0] : memref<8x16xf32, #tpu.memory_space<vmem>>, vector<8x16xf32>
    %c0_1 = arith.constant 0 : index
    %c0_2 = arith.constant 0 : index
    %1 = vector.load %arg2[%c0_1, %c0_2] : memref<80x128xf32, #tpu.memory_space<vmem>>, vector<16x48xf32>
    %c72 = arith.constant 72 : index
    %c0_3 = arith.constant 0 : index
    %2 = vector.load %arg2[%c72, %c0_3] : memref<80x128xf32, #tpu.memory_space<vmem>>, vector<1x48xf32>
    %cst = arith.constant dense<0.000000e+00> : vector<8x48xf32>
    %3 = tpu.matmul %0, %1, %cst {dimension_numbers = #tpu.dot_dimension_numbers<[1], [0], [0], [1], [0, 0, 1, 1], [], []>} : vector<8x16xf32>, vector<16x48xf32>, vector<8x48xf32> -> vector<8x48xf32>
    %4 = vector.broadcast %2 : vector<1x48xf32> to vector<8x48xf32>
    %5 = arith.addf %3, %4 : vector<8x48xf32>
    %6 = vector.extract_strided_slice %5 {offsets = [0, 0], sizes = [8, 32], strides = [1, 1]} : vector<8x48xf32> to vector<8x32xf32>
    %cst_4 = arith.constant 0.000000e+00 : f32
    %7 = vector.broadcast %cst_4 : f32 to vector<8x32xf32>
    %8 = arith.maximumf %6, %7 : vector<8x32xf32>
    %9 = vector.extract_strided_slice %5 {offsets = [0, 32], sizes = [8, 16], strides = [1, 1]} : vector<8x48xf32> to vector<8x16xf32>
    %c16 = arith.constant 16 : index
    %c0_5 = arith.constant 0 : index
    %10 = vector.load %arg2[%c16, %c0_5] : memref<80x128xf32, #tpu.memory_space<vmem>>, vector<32x24xf32>
    %c73 = arith.constant 73 : index
    %c0_6 = arith.constant 0 : index
    %11 = vector.load %arg2[%c73, %c0_6] : memref<80x128xf32, #tpu.memory_space<vmem>>, vector<1x24xf32>
    %cst_7 = arith.constant dense<0.000000e+00> : vector<8x24xf32>
    %12 = tpu.matmul %8, %10, %cst_7 {dimension_numbers = #tpu.dot_dimension_numbers<[1], [0], [0], [1], [0, 0, 1, 1], [], []>} : vector<8x32xf32>, vector<32x24xf32>, vector<8x24xf32> -> vector<8x24xf32>
    %13 = vector.broadcast %11 : vector<1x24xf32> to vector<8x24xf32>
    %14 = arith.addf %12, %13 : vector<8x24xf32>
    %15 = vector.extract_strided_slice %14 {offsets = [0, 0], sizes = [8, 16], strides = [1, 1]} : vector<8x24xf32> to vector<8x16xf32>
    %16 = arith.addf %15, %9 : vector<8x16xf32>
    %cst_8 = arith.constant 0.000000e+00 : f32
    %17 = vector.broadcast %cst_8 : f32 to vector<8x16xf32>
    %18 = arith.maximumf %16, %17 : vector<8x16xf32>
    %19 = vector.extract_strided_slice %14 {offsets = [0, 16], sizes = [8, 8], strides = [1, 1]} : vector<8x24xf32> to vector<8x8xf32>
    %c48 = arith.constant 48 : index
    %c0_9 = arith.constant 0 : index
    %20 = vector.load %arg2[%c48, %c0_9] : memref<80x128xf32, #tpu.memory_space<vmem>>, vector<16x8xf32>
    %c74 = arith.constant 74 : index
    %c0_10 = arith.constant 0 : index
    %21 = vector.load %arg2[%c74, %c0_10] : memref<80x128xf32, #tpu.memory_space<vmem>>, vector<1x8xf32>
    %cst_11 = arith.constant dense<0.000000e+00> : vector<8x8xf32>
    %22 = tpu.matmul %18, %20, %cst_11 {dimension_numbers = #tpu.dot_dimension_numbers<[1], [0], [0], [1], [0, 0, 1, 1], [], []>} : vector<8x16xf32>, vector<16x8xf32>, vector<8x8xf32> -> vector<8x8xf32>
    %23 = vector.broadcast %21 : vector<1x8xf32> to vector<8x8xf32>
    %24 = arith.addf %22, %23 : vector<8x8xf32>
    %25 = arith.addf %24, %19 : vector<8x8xf32>
    %cst_12 = arith.constant 0.000000e+00 : f32
    %26 = vector.broadcast %cst_12 : f32 to vector<8x8xf32>
    %27 = arith.maximumf %25, %26 : vector<8x8xf32>
    %c64 = arith.constant 64 : index
    %c0_13 = arith.constant 0 : index
    %28 = vector.load %arg2[%c64, %c0_13] : memref<80x128xf32, #tpu.memory_space<vmem>>, vector<8x4xf32>
    %c75 = arith.constant 75 : index
    %c0_14 = arith.constant 0 : index
    %29 = vector.load %arg2[%c75, %c0_14] : memref<80x128xf32, #tpu.memory_space<vmem>>, vector<1x4xf32>
    %cst_15 = arith.constant dense<0.000000e+00> : vector<8x4xf32>
    %30 = tpu.matmul %27, %28, %cst_15 {dimension_numbers = #tpu.dot_dimension_numbers<[1], [0], [0], [1], [0, 0, 1, 1], [], []>} : vector<8x8xf32>, vector<8x4xf32>, vector<8x4xf32> -> vector<8x4xf32>
    %31 = vector.broadcast %29 : vector<1x4xf32> to vector<8x4xf32>
    %32 = arith.addf %30, %31 : vector<8x4xf32>
    %c0_16 = arith.constant 0 : index
    %c0_17 = arith.constant 0 : index
    %33 = vector.load %arg3[%c0_16, %c0_17] : memref<8x4xf32, #tpu.memory_space<vmem>>, vector<8x4xf32>
    tpu.vector_store %arg3[%c0_16, %c0_17], %32 {strides = array<i32>} : memref<8x4xf32, #tpu.memory_space<vmem>>, vector<8x4xf32>,
    return
  }
  func.func @transform_0(%arg0: i32) -> (i32, i32) {
    %c0_i32 = arith.constant 0 : i32
    %c0_i32_0 = arith.constant 0 : i32
    return %arg0, %c0_i32 : i32, i32
  }
  func.func @transform_1(%arg0: i32) -> (i32, i32) {
    %c0_i32 = arith.constant 0 : i32
    %c0_i32_0 = arith.constant 0 : i32
    %c0_i32_1 = arith.constant 0 : i32
    return %c0_i32, %c0_i32_0 : i32, i32
  }
  func.func @transform_2(%arg0: i32) -> (i32, i32) {
    %c0_i32 = arith.constant 0 : i32
    %c0_i32_0 = arith.constant 0 : i32
    return %arg0, %c0_i32 : i32, i32
  }
}

</mosaic_0001>

<llo_original>
// kernel: tpu_custom_call.1
$region0: #{tpu_custom_call.1}
  #allocation0 [shape = 'u32[]', space=smem, size = 0x4, offset = 0x4, fixed_abs, tag = 'smem constant byte address 0x4 - core index']
  #allocation1 [shape = 'u32[72,128]{1,0:T(1,128)}', space=vmem, size = 0x9000, scoped, tag = 'internal scratch']
  %s0 = inlined_call_operand.hbm [shape: f32[8,16], index: 0, kind: input, shape index: {}]
  %s1 = inlined_call_operand.hbm [shape: f32[80,128], index: 1, kind: input, shape index: {}]
  %s2 = inlined_call_operand.vmem [shape: f32[8,4], index: 2, kind: output, shape index: {}]
  %s3 = sld [smem:[#allocation0]]
  $region26: #{tpu_custom_call.1} parent=0
    _
  %s5 = ssub.s32 1, %s3
  %s6 = scalar_select 0, %s5, %s3
  $region1: #{tpu_custom_call.1} parent=0
    #allocation2 [shape = 'u8[4096]{0}', space=vmem, size = 0x1000, scoped, tag = 'input window, operand 0, single buffered']
    #allocation3 [shape = 's32[1]{0}', space=sflag, size = 0x4, scoped, tag = 'scoped memory for tpu_custom_call.1']
    #allocation4 [shape = 'u8[40960]{0}', space=vmem, size = 0xa000, scoped, tag = 'input window, operand 1, single buffered']
    #allocation5 [shape = 's32[1]{0}', space=sflag, size = 0x4, scoped, tag = 'scoped memory for tpu_custom_call.1']
    %7 = vsyncpa [#allocation3], 0
    %8 = vsyncpa [#allocation5], 0
    // Predicated region
    $region2: #{tpu_custom_call.1} parent=1 // pred_check
      _
    $region3: #{tpu_custom_call.1} parent=1 // pred_check_branch
      %10 = sbr.rel (0) target = $region5
    $region4: #{tpu_custom_call.1} parent=1 // pred_region
      %12 = vsyncadd [#allocation3], 0
      %s14 = sshll.u32 %s0, 4
      %s15 = int_to_ptr.hbm [resolvable:$true] %s14
      %s16 = sshll.u32 [#allocation2], 4
      %s17 = int_to_ptr.vmem [resolvable:$true] %s16
      %19 = dma.hbm_to_vmem [thread:$0]  %s15, 128, %s17, [#allocation3]
    $region5: #{tpu_custom_call.1} parent=1 // pred_fallthru
      _
    // Predicated region
    $region6: #{tpu_custom_call.1} parent=1 // pred_check
      _
    $region7: #{tpu_custom_call.1} parent=1 // pred_check_branch
      %21 = sbr.rel (0) target = $region9
    $region8: #{tpu_custom_call.1} parent=1 // pred_region
      %23 = vsyncadd [#allocation5], 0
      %s24 = sshll.u32 %s1, 4
      %s25 = int_to_ptr.hbm [resolvable:$true] %s24
      %s26 = sshll.u32 [#allocation4], 4
      %s27 = int_to_ptr.vmem [resolvable:$true] %s26
      %32 = dma.hbm_to_vmem [thread:$0]  %s25, 1280, %s27, [#allocation5], 128, 128, 8
    $region9: #{tpu_custom_call.1} parent=1 // pred_fallthru
      _
    // Predicated region
    $region10: #{tpu_custom_call.1} parent=1 // pred_check
      _
    $region11: #{tpu_custom_call.1} parent=1 // pred_check_branch
      %34 = sbr.rel (0) target = $region13
    $region12: #{tpu_custom_call.1} parent=1 // pred_region
      %36 = dma.done [#allocation3], 128
    $region13: #{tpu_custom_call.1} parent=1 // pred_fallthru
      _
    // Predicated region
    $region14: #{tpu_custom_call.1} parent=1 // pred_check
      _
    $region15: #{tpu_custom_call.1} parent=1 // pred_check_branch
      %38 = sbr.rel (0) target = $region17
    $region16: #{tpu_custom_call.1} parent=1 // pred_region
      %40 = dma.done [#allocation5], 1280
    $region17: #{tpu_custom_call.1} parent=1 // pred_fallthru
      _
    %v41 = vld [vmem:[#allocation2] sm:$0xff]
    %v42 = vld [vmem:[#allocation4] sm:$0xff]
    %v43 = vld [vmem:[#allocation4 + $0x8] sm:$0xff]
    %v44 = vld [vmem:[#allocation4 + $0x48] sm:$0x1]
    %v45 = vperm.slane %v44, 0
    %vm46 = vcmask 130048
    %v48 = vsel %vm46, %v41, 0
    %50 = vmatpush.msra.mxu0 0.0
    %51 = vmatpush.msra.mxu0 0.0
    %52 = vmatpush.msra.mxu0 0.0
    %53 = vmatpush.msra.mxu0 0.0
    %54 = vmatpush.msra.mxu0 0.0
    %55 = vmatpush.msra.mxu0 0.0
    %56 = vmatpush.msra.mxu0 0.0
    %57 = vmatpush.msra.mxu0 0.0
    %58 = vmatpush.msra.mxu0 0.0
    %59 = vmatpush.msra.mxu0 0.0
    %60 = vmatpush.msra.mxu0 0.0
    %61 = vmatpush.msra.mxu0 0.0
    %62 = vmatpush.msra.mxu0 0.0
    %63 = vmatpush.msra.mxu0 0.0
    %64 = vmatpush.msra.mxu0 %v43
    %65 = vmatpush.msra.mxu0 %v42
    %66 = vmatmul.f32.gmra.mxu0 %v48
    %v67 = vpop.f32.mrf.mxu0
    %v68 = vadd.f32 %v45, %v67
    %69 = vdwg.mxu0
    %v70 = vmax.f32 %v68, 0.0
    %v71 = vld [vmem:[#allocation4 + $0x10] sm:$0xff]
    %v72 = vld [vmem:[#allocation4 + $0x18] sm:$0xff]
    %v73 = vld [vmem:[#allocation4 + $0x20] sm:$0xff]
    %v74 = vld [vmem:[#allocation4 + $0x28] sm:$0xff]
    %v75 = vld [vmem:[#allocation4 + $0x49] sm:$0x1]
    %v76 = vperm.slane %v75, 0
    %vm77 = vcmask 261120
    %v79 = vsel %vm77, %v70, 0
    %81 = vmatpush.msra.mxu0 0.0
    %82 = vmatpush.msra.mxu0 0.0
    %83 = vmatpush.msra.mxu0 0.0
    %84 = vmatpush.msra.mxu0 0.0
    %85 = vmatpush.msra.mxu0 0.0
    %86 = vmatpush.msra.mxu0 0.0
    %87 = vmatpush.msra.mxu0 0.0
    %88 = vmatpush.msra.mxu0 0.0
    %89 = vmatpush.msra.mxu0 0.0
    %90 = vmatpush.msra.mxu0 0.0
    %91 = vmatpush.msra.mxu0 0.0
    %92 = vmatpush.msra.mxu0 0.0
    %93 = vmatpush.msra.mxu0 %v74
    %94 = vmatpush.msra.mxu0 %v73
    %95 = vmatpush.msra.mxu0 %v72
    %96 = vmatpush.msra.mxu0 %v71
    %97 = vmatmul.f32.gmra.mxu0 %v79
    %v98 = vpop.f32.mrf.mxu0
    %v99 = vadd.f32 %v76, %v98
    %100 = vdwg.mxu0
    %102 = vrot.lane.b32.xlu0 %v68, 96
    %v103 = vpop.permute.xlu0 %102
    %v105 = vadd.f32 %v99, %v103
    %v106 = vmax.f32 %v105, 0.0
    %v107 = vld [vmem:[#allocation4 + $0x30] sm:$0xff]
    %v108 = vld [vmem:[#allocation4 + $0x38] sm:$0xff]
    %v109 = vld [vmem:[#allocation4 + $0x4a] sm:$0x1]
    %v110 = vperm.slane %v109, 0
    %v112 = vsel %vm46, %v106, 0
    %114 = vmatpush.msra.mxu0 0.0
    %115 = vmatpush.msra.mxu0 0.0
    %116 = vmatpush.msra.mxu0 0.0
    %117 = vmatpush.msra.mxu0 0.0
    %118 = vmatpush.msra.mxu0 0.0
    %119 = vmatpush.msra.mxu0 0.0
    %120 = vmatpush.msra.mxu0 0.0
    %121 = vmatpush.msra.mxu0 0.0
    %122 = vmatpush.msra.mxu0 0.0
    %123 = vmatpush.msra.mxu0 0.0
    %124 = vmatpush.msra.mxu0 0.0
    %125 = vmatpush.msra.mxu0 0.0
    %126 = vmatpush.msra.mxu0 0.0
    %127 = vmatpush.msra.mxu0 0.0
    %128 = vmatpush.msra.mxu0 %v108
    %129 = vmatpush.msra.mxu0 %v107
    %130 = vmatmul.f32.gmra.mxu0 %v112
    %v131 = vpop.f32.mrf.mxu0
    %v132 = vadd.f32 %v110, %v131
    %133 = vdwg.mxu0
    %135 = vrot.lane.b32.xlu0 %v99, 112
    %v136 = vpop.permute.xlu0 %135
    %v138 = vadd.f32 %v132, %v136
    %v139 = vmax.f32 %v138, 0.0
    %v140 = vld [vmem:[#allocation4 + $0x40] sm:$0xff]
    %v141 = vld [vmem:[#allocation4 + $0x4b] sm:$0x1]
    %v142 = vperm.slane %v141, 0
    %vm143 = vcmask 64512
    %v145 = vsel %vm143, %v139, 0
    %147 = vmatpush.msra.mxu0 0.0
    %148 = vmatpush.msra.mxu0 0.0
    %149 = vmatpush.msra.mxu0 0.0
    %150 = vmatpush.msra.mxu0 0.0
    %151 = vmatpush.msra.mxu0 0.0
    %152 = vmatpush.msra.mxu0 0.0
    %153 = vmatpush.msra.mxu0 0.0
    %154 = vmatpush.msra.mxu0 0.0
    %155 = vmatpush.msra.mxu0 0.0
    %156 = vmatpush.msra.mxu0 0.0
    %157 = vmatpush.msra.mxu0 0.0
    %158 = vmatpush.msra.mxu0 0.0
    %159 = vmatpush.msra.mxu0 0.0
    %160 = vmatpush.msra.mxu0 0.0
    %161 = vmatpush.msra.mxu0 0.0
    %162 = vmatpush.msra.mxu0 %v140
    %163 = vmatmul.f32.gmra.mxu0 %v145
    %v164 = vpop.f32.mrf.mxu0
    %v165 = vadd.f32 %v142, %v164
    %166 = vdwg.mxu0
    %vm167 = vcmask 31744
    %168 = vst.msk [vmem:[%s2] sm:$0xff] %vm167, %v165
    // Predicated region
    $region18: #{tpu_custom_call.1} parent=1 // pred_check
      _
    $region19: #{tpu_custom_call.1} parent=1 // pred_check_branch
      %170 = sbr.rel (0) target = $region21
    $region20: #{tpu_custom_call.1} parent=1 // pred_region
      _
    $region21: #{tpu_custom_call.1} parent=1 // pred_fallthru
      _
    // Predicated region
    $region22: #{tpu_custom_call.1} parent=1 // pred_check
      _
    $region23: #{tpu_custom_call.1} parent=1 // pred_check_branch
      %172 = sbr.rel (0) target = $region25
    $region24: #{tpu_custom_call.1} parent=1 // pred_region
      _
    $region25: #{tpu_custom_call.1} parent=1 // pred_fallthru
      _
    %173 = vsyncpa [#allocation3], 1
    %174 = vsyncpa [#allocation5], 1

</llo_original>
